<compile_context>
chip_gen: v7x
topology: tpu7x:2x2x1
jax: 0.10.0
libtpu: 0.0.40
codegen_flags: <defaults>
</compile_context>

<pallas_src>
import functools

import jax
import jax.numpy as jnp
from jax.experimental import pallas as pl
from jax.experimental.pallas import tpu as pltpu

HIDDEN = 128
OUT_PAD = 128  # lane-dense padded output width (multiple of 128 -> unmasked vst)


def dqn_kernel(x_ref, w1_ref, b1_ref, w2_ref, b2_ref, w3_ref, b3_ref, out_ref):
    # x arrives f32; cast to bf16 in-kernel (avoids a separate XLA pass over x).
    x = x_ref[...].astype(jnp.bfloat16)

    # fc1 + relu (bf16 MXU inputs, f32 accumulation)
    h1 = jnp.dot(x, w1_ref[...], preferred_element_type=jnp.float32) + b1_ref[...]
    h1 = jnp.maximum(h1, 0.0).astype(jnp.bfloat16)

    # fc2 + relu
    h2 = jnp.dot(h1, w2_ref[...], preferred_element_type=jnp.float32) + b2_ref[...]
    h2 = jnp.maximum(h2, 0.0).astype(jnp.bfloat16)

    # fc3 (padded to 128 lanes; pad bias = -1e30 -> exactly 0 softmax mass)
    logits = jnp.dot(h2, w3_ref[...], preferred_element_type=jnp.float32) + b3_ref[...]

    # numerically stable softmax along last axis; exact reciprocal on the EUP
    m = jnp.max(logits, axis=-1, keepdims=True)
    e = jnp.exp(logits - m)
    denom = jnp.sum(e, axis=-1, keepdims=True)
    out_ref[...] = (e * pl.reciprocal(denom, approx=False)).astype(out_ref.dtype)


def prepare_params(params):
    """One-time weight prep, hoisted out of the per-call path:
    pad fc3 to OUT_PAD lanes, cast weights to bf16, reshape biases to (1, N)."""
    w1, b1 = params["w1"], params["b1"]
    w2, b2 = params["w2"], params["b2"]
    w3, b3 = params["w3"], params["b3"]
    hidden = w1.shape[1]
    output_dim = w3.shape[1]

    w3p = jnp.zeros((hidden, OUT_PAD), jnp.float32).at[:, :output_dim].set(w3)
    b3p = jnp.full((1, OUT_PAD), -1e30, jnp.float32).at[:, :output_dim].set(
        jnp.reshape(b3, (1, output_dim))
    )
    prep = {
        "w1": w1.astype(jnp.bfloat16),
        "b1": jnp.reshape(b1, (1, hidden)).astype(jnp.float32),
        "w2": w2.astype(jnp.bfloat16),
        "b2": jnp.reshape(b2, (1, hidden)).astype(jnp.float32),
        "w3": w3p.astype(jnp.bfloat16),
        "b3": b3p,  # f32, padded columns hold -1e30
    }
    return prep, output_dim


def _round16(n):
    return ((n + 15) // 16) * 16


def _pick_tb(batch):
    # >=16 rows (bf16 sublane packing), aim for >=4 grid steps on large batches
    # (lets v7x shard the parallel batch axis across its 2 TCs), cap at 1024.
    return min(1024, max(16, _round16(pl.cdiv(batch, 4))))


@functools.partial(jax.jit, static_argnames=("output_dim",))
def dqn_forward(x, prep, *, output_dim):
    """x: [B, input_dim] float32. Returns [B, output_dim] bf16 probabilities."""
    B, input_dim = x.shape
    hidden = prep["w1"].shape[1]

    TB = _pick_tb(B)
    grid = (pl.cdiv(B, TB),)  # ragged last block handled by Pallas (no wrapper pad)

    flops = 2 * B * (input_dim * hidden + hidden * hidden + hidden * OUT_PAD)
    bytes_accessed = (
        x.size * 4
        + (prep["w1"].size + prep["w2"].size + prep["w3"].size) * 2
        + (prep["b1"].size + prep["b2"].size + prep["b3"].size) * 4
        + B * OUT_PAD * 2  # bf16 output
    )
    cost = pl.CostEstimate(
        flops=flops,
        transcendentals=B * OUT_PAD + B,  # exp per element + reciprocal per row
        bytes_accessed=bytes_accessed,
    )

    out = pl.pallas_call(
        dqn_kernel,
        out_shape=jax.ShapeDtypeStruct((B, OUT_PAD), jnp.bfloat16),
        grid=grid,
        in_specs=[
            pl.BlockSpec((TB, input_dim), lambda i: (i, 0)),       # x: tiled on batch
            pl.BlockSpec((input_dim, hidden), lambda i: (0, 0)),   # w1: VMEM-resident
            pl.BlockSpec((1, hidden), lambda i: (0, 0)),           # b1
            pl.BlockSpec((hidden, hidden), lambda i: (0, 0)),      # w2
            pl.BlockSpec((1, hidden), lambda i: (0, 0)),           # b2
            pl.BlockSpec((hidden, OUT_PAD), lambda i: (0, 0)),     # w3 (padded)
            pl.BlockSpec((1, OUT_PAD), lambda i: (0, 0)),          # b3 (padded)
        ],
        out_specs=pl.BlockSpec((TB, OUT_PAD), lambda i: (i, 0)),
        compiler_params=pltpu.CompilerParams(dimension_semantics=("parallel",)),
        cost_estimate=cost,
    )(x, prep["w1"], prep["b1"], prep["w2"], prep["b2"], prep["w3"], prep["b3"])

    return out[:, :output_dim]


def init_params(key, input_dim, output_dim, hidden=HIDDEN):
    """Deterministic synthetic init (uniform, roughly matching nn.Linear scale)."""
    ks = jax.random.split(key, 6)

    def lin(kw, kb, fan_in, fan_out):
        bound = 1.0 / jnp.sqrt(float(fan_in))
        w = jax.random.uniform(kw, (fan_in, fan_out), jnp.float32, -bound, bound)
        b = jax.random.uniform(kb, (fan_out,), jnp.float32, -bound, bound)
        return w, b

    w1, b1 = lin(ks[0], ks[1], input_dim, hidden)
    w2, b2 = lin(ks[2], ks[3], hidden, hidden)
    w3, b3 = lin(ks[4], ks[5], hidden, output_dim)
    return {"w1": w1, "b1": b1, "w2": w2, "b2": b2, "w3": w3, "b3": b3}


def dqn_reference(x, params):
    """Pure-JAX f32 reference for correctness checking."""
    h1 = jnp.maximum(x @ params["w1"] + params["b1"], 0.0)
    h2 = jnp.maximum(h1 @ params["w2"] + params["b2"], 0.0)
    logits = h2 @ params["w3"] + params["b3"]
    return jax.nn.softmax(logits, axis=-1)


if __name__ == "__main__":
    key = jax.random.PRNGKey(0)
    k_x, k_p = jax.random.split(key)

    batch = 2
    input_dim = 32
    output_dim = 8

    x = jax.random.normal(k_x, (batch, input_dim), dtype=jnp.float32)
    params = init_params(k_p, input_dim, output_dim)
    prep, out_dim = prepare_params(params)

    out = dqn_forward(x, prep, output_dim=out_dim)
    out = jax.block_until_ready(out)

    # sanity: shape, softmax rows sum to ~1, matches f32 reference.
    # (output is bf16, so tolerances are loosened accordingly)
    assert out.shape == (batch, output_dim)
    out_f32 = out.astype(jnp.float32)
    assert jnp.allclose(jnp.sum(out_f32, axis=-1), 1.0, atol=1e-2)
    ref = dqn_reference(x, params)
    assert jnp.allclose(out_f32, ref, atol=5e-2), "mismatch vs reference"

    print("KERNEL_OK")
</pallas_src>

<mosaic_0001>
module attributes {stable_mosaic.version = 11 : i64} {
  func.func @dqn_kernel(%arg0: i32, %arg1: memref<16x32xf32, #tpu.memory_space<vmem>>, %arg2: memref<32x128xbf16, #tpu.memory_space<vmem>>, %arg3: memref<1x128xf32, #tpu.memory_space<vmem>>, %arg4: memref<128x128xbf16, #tpu.memory_space<vmem>>, %arg5: memref<1x128xf32, #tpu.memory_space<vmem>>, %arg6: memref<128x128xbf16, #tpu.memory_space<vmem>>, %arg7: memref<1x128xf32, #tpu.memory_space<vmem>>, %arg8: memref<16x128xbf16, #tpu.memory_space<vmem>>) attributes {dimension_semantics = [#tpu.dimension_semantics<parallel>], iteration_bounds = array<i64: 1>, scalar_prefetch = 0 : i64, scratch_operands = 0 : i64, tpu.core_type = #tpu.core_type<tc>, window_params = [{transform_indices = @transform_0, window_bounds = array<i64: 16, 32>}, {pipeline_mode = #tpu.pipeline_mode<synchronous>, transform_indices = @transform_1, window_bounds = array<i64: 32, 128>}, {pipeline_mode = #tpu.pipeline_mode<synchronous>, transform_indices = @transform_2, window_bounds = array<i64: 1, 128>}, {pipeline_mode = #tpu.pipeline_mode<synchronous>, transform_indices = @transform_3, window_bounds = array<i64: 128, 128>}, {pipeline_mode = #tpu.pipeline_mode<synchronous>, transform_indices = @transform_4, window_bounds = array<i64: 1, 128>}, {pipeline_mode = #tpu.pipeline_mode<synchronous>, transform_indices = @transform_5, window_bounds = array<i64: 128, 128>}, {pipeline_mode = #tpu.pipeline_mode<synchronous>, transform_indices = @transform_6, window_bounds = array<i64: 1, 128>}, {transform_indices = @transform_7, window_bounds = array<i64: 16, 128>}]} {
    %c0 = arith.constant 0 : index
    %c0_0 = arith.constant 0 : index
    %0 = vector.load %arg1[%c0, %c0_0] : memref<16x32xf32, #tpu.memory_space<vmem>>, vector<16x32xf32>
    %1 = arith.truncf %0 : vector<16x32xf32> to vector<16x32xbf16>
    %c0_1 = arith.constant 0 : index
    %c0_2 = arith.constant 0 : index
    %2 = vector.load %arg2[%c0_1, %c0_2] : memref<32x128xbf16, #tpu.memory_space<vmem>>, vector<32x128xbf16>
    %cst = arith.constant dense<0.000000e+00> : vector<16x128xf32>
    %3 = tpu.matmul %1, %2, %cst {dimension_numbers = #tpu.dot_dimension_numbers<[1], [0], [0], [1], [0, 0, 1, 1], [], []>} : vector<16x32xbf16>, vector<32x128xbf16>, vector<16x128xf32> -> vector<16x128xf32>
    %c0_3 = arith.constant 0 : index
    %c0_4 = arith.constant 0 : index
    %4 = vector.load %arg3[%c0_3, %c0_4] : memref<1x128xf32, #tpu.memory_space<vmem>>, vector<1x128xf32>
    %5 = vector.broadcast %4 : vector<1x128xf32> to vector<16x128xf32>
    %6 = arith.addf %3, %5 : vector<16x128xf32>
    %cst_5 = arith.constant 0.000000e+00 : f32
    %7 = vector.broadcast %cst_5 : f32 to vector<16x128xf32>
    %8 = arith.maximumf %6, %7 : vector<16x128xf32>
    %9 = arith.truncf %8 : vector<16x128xf32> to vector<16x128xbf16>
    %c0_6 = arith.constant 0 : index
    %c0_7 = arith.constant 0 : index
    %10 = vector.load %arg4[%c0_6, %c0_7] : memref<128x128xbf16, #tpu.memory_space<vmem>>, vector<128x128xbf16>
    %cst_8 = arith.constant dense<0.000000e+00> : vector<16x128xf32>
    %11 = tpu.matmul %9, %10, %cst_8 {dimension_numbers = #tpu.dot_dimension_numbers<[1], [0], [0], [1], [0, 0, 1, 1], [], []>} : vector<16x128xbf16>, vector<128x128xbf16>, vector<16x128xf32> -> vector<16x128xf32>
    %c0_9 = arith.constant 0 : index
    %c0_10 = arith.constant 0 : index
    %12 = vector.load %arg5[%c0_9, %c0_10] : memref<1x128xf32, #tpu.memory_space<vmem>>, vector<1x128xf32>
    %13 = vector.broadcast %12 : vector<1x128xf32> to vector<16x128xf32>
    %14 = arith.addf %11, %13 : vector<16x128xf32>
    %cst_11 = arith.constant 0.000000e+00 : f32
    %15 = vector.broadcast %cst_11 : f32 to vector<16x128xf32>
    %16 = arith.maximumf %14, %15 : vector<16x128xf32>
    %17 = arith.truncf %16 : vector<16x128xf32> to vector<16x128xbf16>
    %c0_12 = arith.constant 0 : index
    %c0_13 = arith.constant 0 : index
    %18 = vector.load %arg6[%c0_12, %c0_13] : memref<128x128xbf16, #tpu.memory_space<vmem>>, vector<128x128xbf16>
    %cst_14 = arith.constant dense<0.000000e+00> : vector<16x128xf32>
    %19 = tpu.matmul %17, %18, %cst_14 {dimension_numbers = #tpu.dot_dimension_numbers<[1], [0], [0], [1], [0, 0, 1, 1], [], []>} : vector<16x128xbf16>, vector<128x128xbf16>, vector<16x128xf32> -> vector<16x128xf32>
    %c0_15 = arith.constant 0 : index
    %c0_16 = arith.constant 0 : index
    %20 = vector.load %arg7[%c0_15, %c0_16] : memref<1x128xf32, #tpu.memory_space<vmem>>, vector<1x128xf32>
    %21 = vector.broadcast %20 : vector<1x128xf32> to vector<16x128xf32>
    %22 = arith.addf %19, %21 : vector<16x128xf32>
    %cst_17 = arith.constant dense<0xFF800000> : vector<16xf32>
    %23 = vector.multi_reduction <maximumf>, %22, %cst_17 [1] : vector<16x128xf32> to vector<16xf32>
    %24 = vector.shape_cast %23 : vector<16xf32> to vector<16x1xf32>
    %25 = vector.broadcast %24 : vector<16x1xf32> to vector<16x128xf32>
    %26 = arith.subf %22, %25 : vector<16x128xf32>
    %27 = math.exp %26 : vector<16x128xf32>
    %cst_18 = arith.constant dense<0.000000e+00> : vector<16xf32>
    %28 = vector.multi_reduction <add>, %27, %cst_18 [1] : vector<16x128xf32> to vector<16xf32>
    %29 = vector.shape_cast %28 : vector<16xf32> to vector<16x1xf32>
    %30 = tpu.reciprocal %29 : vector<16x1xf32> -> vector<16x1xf32>
    %31 = vector.broadcast %30 : vector<16x1xf32> to vector<16x128xf32>
    %32 = arith.mulf %27, %31 : vector<16x128xf32>
    %33 = arith.truncf %32 : vector<16x128xf32> to vector<16x128xbf16>
    %c0_19 = arith.constant 0 : index
    %c0_20 = arith.constant 0 : index
    %34 = vector.load %arg8[%c0_19, %c0_20] : memref<16x128xbf16, #tpu.memory_space<vmem>>, vector<16x128xbf16>
    tpu.vector_store %arg8[%c0_19, %c0_20], %33 {strides = array<i32>} : memref<16x128xbf16, #tpu.memory_space<vmem>>, vector<16x128xbf16>,
    return
  }
  func.func @transform_0(%arg0: i32) -> (i32, i32) {
    %c0_i32 = arith.constant 0 : i32
    %c0_i32_0 = arith.constant 0 : i32
    return %arg0, %c0_i32 : i32, i32
  }
  func.func @transform_1(%arg0: i32) -> (i32, i32) {
    %c0_i32 = arith.constant 0 : i32
    %c0_i32_0 = arith.constant 0 : i32
    %c0_i32_1 = arith.constant 0 : i32
    return %c0_i32, %c0_i32_0 : i32, i32
  }
  func.func @transform_2(%arg0: i32) -> (i32, i32) {
    %c0_i32 = arith.constant 0 : i32
    %c0_i32_0 = arith.constant 0 : i32
    %c0_i32_1 = arith.constant 0 : i32
    return %c0_i32, %c0_i32_0 : i32, i32
  }
  func.func @transform_3(%arg0: i32) -> (i32, i32) {
    %c0_i32 = arith.constant 0 : i32
    %c0_i32_0 = arith.constant 0 : i32
    %c0_i32_1 = arith.constant 0 : i32
    return %c0_i32, %c0_i32_0 : i32, i32
  }
  func.func @transform_4(%arg0: i32) -> (i32, i32) {
    %c0_i32 = arith.constant 0 : i32
    %c0_i32_0 = arith.constant 0 : i32
    %c0_i32_1 = arith.constant 0 : i32
    return %c0_i32, %c0_i32_0 : i32, i32
  }
  func.func @transform_5(%arg0: i32) -> (i32, i32) {
    %c0_i32 = arith.constant 0 : i32
    %c0_i32_0 = arith.constant 0 : i32
    %c0_i32_1 = arith.constant 0 : i32
    return %c0_i32, %c0_i32_0 : i32, i32
  }
  func.func @transform_6(%arg0: i32) -> (i32, i32) {
    %c0_i32 = arith.constant 0 : i32
    %c0_i32_0 = arith.constant 0 : i32
    %c0_i32_1 = arith.constant 0 : i32
    return %c0_i32, %c0_i32_0 : i32, i32
  }
  func.func @transform_7(%arg0: i32) -> (i32, i32) {
    %c0_i32 = arith.constant 0 : i32
    %c0_i32_0 = arith.constant 0 : i32
    return %arg0, %c0_i32 : i32, i32
  }
}

</mosaic_0001>

<llo_original>
// kernel: dqn_forward.1
$region0: #{dqn_forward.1}
  #allocation0 [shape = 'u32[]', space=smem, size = 0x4, offset = 0x4, fixed_abs, tag = 'smem constant byte address 0x4 - core index']
  #allocation1 [shape = 'u32[144,128]{1,0:T(1,128)}', space=vmem, size = 0x12000, scoped, tag = 'internal scratch']
  %s0 = inlined_call_operand.hbm [shape: f32[2,32], index: 0, kind: input, shape index: {}]
  %s1 = inlined_call_operand.hbm [shape: bf16[32,128], index: 1, kind: input, shape index: {}]
  %s2 = inlined_call_operand.vmem [shape: f32[1,128], index: 2, kind: input, shape index: {}]
  %s3 = inlined_call_operand.hbm [shape: bf16[128,128], index: 3, kind: input, shape index: {}]
  %s4 = inlined_call_operand.vmem [shape: f32[1,128], index: 4, kind: input, shape index: {}]
  %s5 = inlined_call_operand.hbm [shape: bf16[128,128], index: 5, kind: input, shape index: {}]
  %s6 = inlined_call_operand.vmem [shape: f32[1,128], index: 6, kind: input, shape index: {}]
  %s7 = inlined_call_operand.hbm [shape: bf16[2,128], index: 7, kind: output, shape index: {}]
  %s8 = sld [smem:[#allocation0]]
  $region54: #{dqn_forward.1} parent=0
    _
  %s10 = ssub.s32 1, %s8
  %s11 = scalar_select 0, %s10, %s8
  $region1: #{dqn_forward.1} parent=0
    #allocation2 [shape = 'u8[8192]{0}', space=vmem, size = 0x2000, scoped, tag = 'input window, operand 0, single buffered']
    #allocation3 [shape = 's32[1]{0}', space=sflag, size = 0x4, scoped, tag = 'scoped memory for dqn_forward.1']
    #allocation4 [shape = 's32[1]{0}', space=sflag, size = 0x4, scoped, tag = 'scoped memory for dqn_forward.1']
    #allocation5 [shape = 'u8[8192]{0}', space=vmem, size = 0x2000, scoped, tag = 'input window, operand 1, single buffered']
    #allocation6 [shape = 's32[1]{0}', space=sflag, size = 0x4, scoped, tag = 'scoped memory for dqn_forward.1']
    #allocation7 [shape = 'u8[32768]{0}', space=vmem, size = 0x8000, scoped, tag = 'input window, operand 3, single buffered']
    #allocation8 [shape = 'u8[32768]{0}', space=vmem, size = 0x8000, scoped, tag = 'input window, operand 5, single buffered']
    #allocation9 [shape = 's32[1]{0}', space=sflag, size = 0x4, scoped, tag = 'scoped memory for dqn_forward.1']
    #allocation10 [shape = 'u8[4096]{0}', space=vmem, size = 0x1000, scoped, tag = 'output window, operand 0, single buffered']
    %12 = vsyncpa [#allocation3], 0
    %13 = vsyncpa [#allocation6], 0
    %14 = vsyncpa [#allocation9], 0
    %15 = vsyncpa [#allocation4], 0
    // Predicated region
    $region2: #{dqn_forward.1} parent=1 // pred_check
      _
    $region3: #{dqn_forward.1} parent=1 // pred_check_branch
      %17 = sbr.rel (0) target = $region5
    $region4: #{dqn_forward.1} parent=1 // pred_region
      %s19 = ssub.s32 256, 32
      %20 = vsyncadd [#allocation3], %s19
      %s21 = sshll.u32 [#allocation2], 4
      %s22 = int_to_ptr.vmem [resolvable:$true] %s21
      %27 = dma.hbm_to_vmem [thread:$0]  %s0, 32, %s22, [#allocation3], 32, 32, 2
    $region5: #{dqn_forward.1} parent=1 // pred_fallthru
      _
    // Predicated region
    $region6: #{dqn_forward.1} parent=1 // pred_check
      _
    $region7: #{dqn_forward.1} parent=1 // pred_check_branch
      %29 = sbr.rel (0) target = $region9
    $region8: #{dqn_forward.1} parent=1 // pred_region
      %s31 = ssub.s32 256, 256
      %32 = vsyncadd [#allocation6], %s31
      %s33 = sshll.u32 [#allocation5], 4
      %s34 = int_to_ptr.vmem [resolvable:$true] %s33
      %39 = dma.hbm_to_vmem [thread:$0]  %s1, 256, %s34, [#allocation6], 64, 64, 4
    $region9: #{dqn_forward.1} parent=1 // pred_fallthru
      _
    // Predicated region
    $region10: #{dqn_forward.1} parent=1 // pred_check
      _
    $region11: #{dqn_forward.1} parent=1 // pred_check_branch
      %41 = sbr.rel (0) target = $region13
    $region12: #{dqn_forward.1} parent=1 // pred_region
      _
    $region13: #{dqn_forward.1} parent=1 // pred_fallthru
      _
    // Predicated region
    $region14: #{dqn_forward.1} parent=1 // pred_check
      _
    $region15: #{dqn_forward.1} parent=1 // pred_check_branch
      %43 = sbr.rel (0) target = $region17
    $region16: #{dqn_forward.1} parent=1 // pred_region
      %s45 = ssub.s32 1024, 1024
      %46 = vsyncadd [#allocation6], %s45
      %s47 = sshll.u32 [#allocation7], 4
      %s48 = int_to_ptr.vmem [resolvable:$true] %s47
      %53 = dma.hbm_to_vmem [thread:$0]  %s3, 1024, %s48, [#allocation6], 64, 64, 4
    $region17: #{dqn_forward.1} parent=1 // pred_fallthru
      _
    // Predicated region
    $region18: #{dqn_forward.1} parent=1 // pred_check
      _
    $region19: #{dqn_forward.1} parent=1 // pred_check_branch
      %55 = sbr.rel (0) target = $region21
    $region20: #{dqn_forward.1} parent=1 // pred_region
      _
    $region21: #{dqn_forward.1} parent=1 // pred_fallthru
      _
    // Predicated region
    $region22: #{dqn_forward.1} parent=1 // pred_check
      _
    $region23: #{dqn_forward.1} parent=1 // pred_check_branch
      %57 = sbr.rel (0) target = $region25
    $region24: #{dqn_forward.1} parent=1 // pred_region
      %s59 = ssub.s32 1024, 1024
      %60 = vsyncadd [#allocation9], %s59
      %s61 = sshll.u32 [#allocation8], 4
      %s62 = int_to_ptr.vmem [resolvable:$true] %s61
      %67 = dma.hbm_to_vmem [thread:$0]  %s5, 1024, %s62, [#allocation9], 64, 64, 4
    $region25: #{dqn_forward.1} parent=1 // pred_fallthru
      _
    // Predicated region
    $region26: #{dqn_forward.1} parent=1 // pred_check
      _
    $region27: #{dqn_forward.1} parent=1 // pred_check_branch
      %69 = sbr.rel (0) target = $region29
    $region28: #{dqn_forward.1} parent=1 // pred_region
      _
    $region29: #{dqn_forward.1} parent=1 // pred_fallthru
      _
    // Predicated region
    $region30: #{dqn_forward.1} parent=1 // pred_check
      _
    $region31: #{dqn_forward.1} parent=1 // pred_check_branch
      %71 = sbr.rel (0) target = $region33
    $region32: #{dqn_forward.1} parent=1 // pred_region
      %72 = dma.done [#allocation3], 256
    $region33: #{dqn_forward.1} parent=1 // pred_fallthru
      _
    // Predicated region
    $region34: #{dqn_forward.1} parent=1 // pred_check
      _
    $region35: #{dqn_forward.1} parent=1 // pred_check_branch
      %74 = sbr.rel (0) target = $region37
    $region36: #{dqn_forward.1} parent=1 // pred_region
      %75 = dma.done [#allocation6], 256
    $region37: #{dqn_forward.1} parent=1 // pred_fallthru
      _
    // Predicated region
    $region38: #{dqn_forward.1} parent=1 // pred_check
      _
    $region39: #{dqn_forward.1} parent=1 // pred_check_branch
      %77 = sbr.rel (0) target = $region41
    $region40: #{dqn_forward.1} parent=1 // pred_region
      %78 = dma.done [#allocation6], 1024
    $region41: #{dqn_forward.1} parent=1 // pred_fallthru
      _
    // Predicated region
    $region42: #{dqn_forward.1} parent=1 // pred_check
      _
    $region43: #{dqn_forward.1} parent=1 // pred_check_branch
      %80 = sbr.rel (0) target = $region45
    $region44: #{dqn_forward.1} parent=1 // pred_region
      %81 = dma.done [#allocation9], 1024
    $region45: #{dqn_forward.1} parent=1 // pred_fallthru
      _
    %v83 = vld [vmem:[#allocation2] sm:$0xff]
    %v84 = vld [vmem:[#allocation2 + $0x8] sm:$0xff]
    %v85 = vpack.c.bf16 %v84, %v83
    %v86 = vld [vmem:[#allocation5] sm:$0xf]
    %v87 = vld [vmem:[#allocation5 + $0x4] sm:$0xf]
    %v88 = vld [vmem:[#allocation5 + $0x8] sm:$0xf]
    %v89 = vld [vmem:[#allocation5 + $0xc] sm:$0xf]
    %v90 = vld [vmem:[%s2] sm:$0x1]
    %v92 = vlaneseq
    %v93 = vshrl.u32 %v92, 7
    %v94 = vsub.s32 0, %v93
    %v95 = vrot.slane %v90, %v94
    %v101 = vunpack.c.l.b16 %v86
    %v102 = vunpack.c.l.b16 %v87
    %v103 = vunpack.c.l.b16 %v88
    %v104 = vunpack.c.l.b16 %v89
    %v105 = vpack.c.b16 %v102, %v101
    %v106 = vpack.c.b16 %v104, %v103
    %vm109 = vcmask 261120
    %v111 = vsel %vm109, %v85, 0
    %113 = vmatprep.subr.bf16.mxu0 0
    %114 = vmatpush1.bf16.msra.mxu0 %v105
    %115 = vmatprep.subr.bf16.mxu0 0
    %116 = vmatpush1.bf16.msra.mxu0 %v106
    %117 = vmatprep.subr.bf16.mxu0 0
    %118 = vmatpush1.bf16.msra.mxu0 0
    %119 = vmatprep.subr.bf16.mxu0 0
    %120 = vmatpush1.bf16.msra.mxu0 0
    %121 = vmatprep.subr.bf16.mxu0 0
    %122 = vmatpush1.bf16.msra.mxu0 0
    %123 = vmatprep.subr.bf16.mxu0 0
    %124 = vmatpush1.bf16.msra.mxu0 0
    %125 = vmatprep.subr.bf16.mxu0 0
    %126 = vmatpush1.bf16.msra.mxu0 0
    %127 = vmatprep.subr.bf16.mxu0 0
    %128 = vmatpush1.bf16.msra.mxu0 0
    %129 = vmatprep.subr.bf16.mxu0 0
    %130 = vmatpush1.bf16.msra.mxu0 0
    %131 = vmatprep.subr.bf16.mxu0 0
    %132 = vmatpush1.bf16.msra.mxu0 0
    %133 = vmatprep.subr.bf16.mxu0 0
    %134 = vmatpush1.bf16.msra.mxu0 0
    %135 = vmatprep.subr.bf16.mxu0 0
    %136 = vmatpush1.bf16.msra.mxu0 0
    %137 = vmatprep.subr.bf16.mxu0 0
    %138 = vmatpush1.bf16.msra.mxu0 0
    %139 = vmatprep.subr.bf16.mxu0 0
    %140 = vmatpush1.bf16.msra.mxu0 0
    %141 = vmatprep.subr.bf16.mxu0 0
    %142 = vmatpush1.bf16.msra.mxu0 0
    %143 = vmatprep.subr.bf16.mxu0 0
    %144 = vmatpush1.bf16.msra.mxu0 0
    %145 = vmatprep.mubr.bf16.mxu0 0
    %146 = vmatmul.mubr.bf16.gmra.mrb[0].mxu0 %v111
    %v147 = vpop.f32.mrb[0].mxu0
    %v148 = vadd.f32 %v95, %v147
    %v149 = vpop.f32.mrb[0].mxu0
    %v150 = vpop.f32.mrb[0].mxu0
    %v151 = vadd.f32 %v95, %v150
    %v152 = vpop.f32.mrb[0].mxu0
    %153 = vdwg.mxu0
    %v154 = vmax.f32 %v148, 0.0
    %v155 = vmax.f32 %v151, 0.0
    %v156 = vpack.c.bf16 %v155, %v154
    %v157 = vld [vmem:[#allocation7] sm:$0xf]
    %v158 = vld [vmem:[#allocation7 + $0x4] sm:$0xf]
    %v159 = vld [vmem:[#allocation7 + $0x8] sm:$0xf]
    %v160 = vld [vmem:[#allocation7 + $0xc] sm:$0xf]
    %v161 = vld [vmem:[#allocation7 + $0x10] sm:$0xf]
    %v162 = vld [vmem:[#allocation7 + $0x14] sm:$0xf]
    %v163 = vld [vmem:[#allocation7 + $0x18] sm:$0xf]
    %v164 = vld [vmem:[#allocation7 + $0x1c] sm:$0xf]
    %v165 = vld [vmem:[#allocation7 + $0x20] sm:$0xf]
    %v166 = vld [vmem:[#allocation7 + $0x24] sm:$0xf]
    %v167 = vld [vmem:[#allocation7 + $0x28] sm:$0xf]
    %v168 = vld [vmem:[#allocation7 + $0x2c] sm:$0xf]
    %v169 = vld [vmem:[#allocation7 + $0x30] sm:$0xf]
    %v170 = vld [vmem:[#allocation7 + $0x34] sm:$0xf]
    %v171 = vld [vmem:[#allocation7 + $0x38] sm:$0xf]
    %v172 = vld [vmem:[#allocation7 + $0x3c] sm:$0xf]
    %v173 = vld [vmem:[%s4] sm:$0x1]
    %v175 = vlaneseq
    %v176 = vshrl.u32 %v175, 7
    %v177 = vsub.s32 0, %v176
    %v178 = vrot.slane %v173, %v177
    %v196 = vunpack.c.l.b16 %v157
    %v197 = vunpack.c.l.b16 %v158
    %v198 = vunpack.c.l.b16 %v159
    %v199 = vunpack.c.l.b16 %v160
    %v200 = vunpack.c.l.b16 %v161
    %v201 = vunpack.c.l.b16 %v162
    %v202 = vunpack.c.l.b16 %v163
    %v203 = vunpack.c.l.b16 %v164
    %v204 = vunpack.c.l.b16 %v165
    %v205 = vunpack.c.l.b16 %v166
    %v206 = vunpack.c.l.b16 %v167
    %v207 = vunpack.c.l.b16 %v168
    %v208 = vunpack.c.l.b16 %v169
    %v209 = vunpack.c.l.b16 %v170
    %v210 = vunpack.c.l.b16 %v171
    %v211 = vunpack.c.l.b16 %v172
    %v212 = vpack.c.b16 %v197, %v196
    %v213 = vpack.c.b16 %v199, %v198
    %v214 = vpack.c.b16 %v201, %v200
    %v215 = vpack.c.b16 %v203, %v202
    %v216 = vpack.c.b16 %v205, %v204
    %v217 = vpack.c.b16 %v207, %v206
    %v218 = vpack.c.b16 %v209, %v208
    %v219 = vpack.c.b16 %v211, %v210
    %228 = vmatprep.subr.bf16.mxu0 0
    %229 = vmatpush1.bf16.msra.mxu0 %v212
    %230 = vmatprep.subr.bf16.mxu0 0
    %231 = vmatpush1.bf16.msra.mxu0 %v213
    %232 = vmatprep.subr.bf16.mxu0 0
    %233 = vmatpush1.bf16.msra.mxu0 %v214
    %234 = vmatprep.subr.bf16.mxu0 0
    %235 = vmatpush1.bf16.msra.mxu0 %v215
    %236 = vmatprep.subr.bf16.mxu0 0
    %237 = vmatpush1.bf16.msra.mxu0 %v216
    %238 = vmatprep.subr.bf16.mxu0 0
    %239 = vmatpush1.bf16.msra.mxu0 %v217
    %240 = vmatprep.subr.bf16.mxu0 0
    %241 = vmatpush1.bf16.msra.mxu0 %v218
    %242 = vmatprep.subr.bf16.mxu0 0
    %243 = vmatpush1.bf16.msra.mxu0 %v219
    %244 = vmatprep.subr.bf16.mxu0 0
    %245 = vmatpush1.bf16.msra.mxu0 0
    %246 = vmatprep.subr.bf16.mxu0 0
    %247 = vmatpush1.bf16.msra.mxu0 0
    %248 = vmatprep.subr.bf16.mxu0 0
    %249 = vmatpush1.bf16.msra.mxu0 0
    %250 = vmatprep.subr.bf16.mxu0 0
    %251 = vmatpush1.bf16.msra.mxu0 0
    %252 = vmatprep.subr.bf16.mxu0 0
    %253 = vmatpush1.bf16.msra.mxu0 0
    %254 = vmatprep.subr.bf16.mxu0 0
    %255 = vmatpush1.bf16.msra.mxu0 0
    %256 = vmatprep.subr.bf16.mxu0 0
    %257 = vmatpush1.bf16.msra.mxu0 0
    %258 = vmatprep.subr.bf16.mxu0 0
    %259 = vmatpush1.bf16.msra.mxu0 0
    %260 = vmatprep.mubr.bf16.mxu0 0
    %261 = vmatmul.mubr.bf16.gmra.mrb[0].mxu0 %v156
    %v262 = vpop.f32.mrb[0].mxu0
    %v263 = vadd.f32 %v178, %v262
    %v264 = vpop.f32.mrb[0].mxu0
    %v265 = vpop.f32.mrb[0].mxu0
    %v266 = vadd.f32 %v178, %v265
    %v267 = vpop.f32.mrb[0].mxu0
    %268 = vdwg.mxu0
    %v269 = vmax.f32 %v263, 0.0
    %v270 = vmax.f32 %v266, 0.0
    %v271 = vpack.c.bf16 %v270, %v269
    %v272 = vld [vmem:[#allocation8] sm:$0xf]
    %v273 = vld [vmem:[#allocation8 + $0x4] sm:$0xf]
    %v274 = vld [vmem:[#allocation8 + $0x8] sm:$0xf]
    %v275 = vld [vmem:[#allocation8 + $0xc] sm:$0xf]
    %v276 = vld [vmem:[#allocation8 + $0x10] sm:$0xf]
    %v277 = vld [vmem:[#allocation8 + $0x14] sm:$0xf]
    %v278 = vld [vmem:[#allocation8 + $0x18] sm:$0xf]
    %v279 = vld [vmem:[#allocation8 + $0x1c] sm:$0xf]
    %v280 = vld [vmem:[#allocation8 + $0x20] sm:$0xf]
    %v281 = vld [vmem:[#allocation8 + $0x24] sm:$0xf]
    %v282 = vld [vmem:[#allocation8 + $0x28] sm:$0xf]
    %v283 = vld [vmem:[#allocation8 + $0x2c] sm:$0xf]
    %v284 = vld [vmem:[#allocation8 + $0x30] sm:$0xf]
    %v285 = vld [vmem:[#allocation8 + $0x34] sm:$0xf]
    %v286 = vld [vmem:[#allocation8 + $0x38] sm:$0xf]
    %v287 = vld [vmem:[#allocation8 + $0x3c] sm:$0xf]
    %v288 = vld [vmem:[%s6] sm:$0x1]
    %v290 = vlaneseq
    %v291 = vshrl.u32 %v290, 7
    %v292 = vsub.s32 0, %v291
    %v293 = vrot.slane %v288, %v292
    %v311 = vunpack.c.l.b16 %v272
    %v312 = vunpack.c.l.b16 %v273
    %v313 = vunpack.c.l.b16 %v274
    %v314 = vunpack.c.l.b16 %v275
    %v315 = vunpack.c.l.b16 %v276
    %v316 = vunpack.c.l.b16 %v277
    %v317 = vunpack.c.l.b16 %v278
    %v318 = vunpack.c.l.b16 %v279
    %v319 = vunpack.c.l.b16 %v280
    %v320 = vunpack.c.l.b16 %v281
    %v321 = vunpack.c.l.b16 %v282
    %v322 = vunpack.c.l.b16 %v283
    %v323 = vunpack.c.l.b16 %v284
    %v324 = vunpack.c.l.b16 %v285
    %v325 = vunpack.c.l.b16 %v286
    %v326 = vunpack.c.l.b16 %v287
    %v327 = vpack.c.b16 %v312, %v311
    %v328 = vpack.c.b16 %v314, %v313
    %v329 = vpack.c.b16 %v316, %v315
    %v330 = vpack.c.b16 %v318, %v317
    %v331 = vpack.c.b16 %v320, %v319
    %v332 = vpack.c.b16 %v322, %v321
    %v333 = vpack.c.b16 %v324, %v323
    %v334 = vpack.c.b16 %v326, %v325
    %343 = vmatprep.subr.bf16.mxu0 0
    %344 = vmatpush1.bf16.msra.mxu0 %v327
    %345 = vmatprep.subr.bf16.mxu0 0
    %346 = vmatpush1.bf16.msra.mxu0 %v328
    %347 = vmatprep.subr.bf16.mxu0 0
    %348 = vmatpush1.bf16.msra.mxu0 %v329
    %349 = vmatprep.subr.bf16.mxu0 0
    %350 = vmatpush1.bf16.msra.mxu0 %v330
    %351 = vmatprep.subr.bf16.mxu0 0
    %352 = vmatpush1.bf16.msra.mxu0 %v331
    %353 = vmatprep.subr.bf16.mxu0 0
    %354 = vmatpush1.bf16.msra.mxu0 %v332
    %355 = vmatprep.subr.bf16.mxu0 0
    %356 = vmatpush1.bf16.msra.mxu0 %v333
    %357 = vmatprep.subr.bf16.mxu0 0
    %358 = vmatpush1.bf16.msra.mxu0 %v334
    %359 = vmatprep.subr.bf16.mxu0 0
    %360 = vmatpush1.bf16.msra.mxu0 0
    %361 = vmatprep.subr.bf16.mxu0 0
    %362 = vmatpush1.bf16.msra.mxu0 0
    %363 = vmatprep.subr.bf16.mxu0 0
    %364 = vmatpush1.bf16.msra.mxu0 0
    %365 = vmatprep.subr.bf16.mxu0 0
    %366 = vmatpush1.bf16.msra.mxu0 0
    %367 = vmatprep.subr.bf16.mxu0 0
    %368 = vmatpush1.bf16.msra.mxu0 0
    %369 = vmatprep.subr.bf16.mxu0 0
    %370 = vmatpush1.bf16.msra.mxu0 0
    %371 = vmatprep.subr.bf16.mxu0 0
    %372 = vmatpush1.bf16.msra.mxu0 0
    %373 = vmatprep.subr.bf16.mxu0 0
    %374 = vmatpush1.bf16.msra.mxu0 0
    %375 = vmatprep.mubr.bf16.mxu0 0
    %376 = vmatmul.mubr.bf16.gmra.mrb[0].mxu0 %v271
    %v377 = vpop.f32.mrb[0].mxu0
    %v378 = vadd.f32 %v293, %v377
    %v379 = vpop.f32.mrb[0].mxu0
    %v380 = vpop.f32.mrb[0].mxu0
    %v381 = vadd.f32 %v293, %v380
    %v382 = vpop.f32.mrb[0].mxu0
    %383 = vdwg.mxu0
    %384 = vmax.xlane.f32.xlu0 %v378
    %v385 = vpop.xlane.xlu0 %384
    %386 = vmax.xlane.f32.xlu0 %v381
    %v387 = vpop.xlane.xlu0 %386
    %v388 = vsub.f32 %v378, %v385
    %v389 = vsub.f32 %v381, %v387
    %v390 = vmul.f32 %v388, 1.442695
    %v391 = vpow.pop %v390
    %v392 = vmul.f32 %v389, 1.442695
    %v393 = vpow.pop %v392
    %394 = vadd.xlane.f32.xlu0 %v391
    %v395 = vpop.xlane.xlu0 %394
    %396 = vadd.xlane.f32.xlu0 %v393
    %v397 = vpop.xlane.xlu0 %396
    %v398 = vrcp.pop %v395
    %v399 = vrcp.pop %v397
    %v400 = vmul.f32 %v391, %v398
    %v401 = vmul.f32 %v393, %v399
    %v402 = vpack.c.bf16 %v401, %v400
    %v404 = vcombine.high %v402, %v402
    %v406 = vunpack.c.l.s4 1966171168
    %v407 = vunpack.c.0.s8 %v406
    %v408 = vlaneseq
    %v409 = vshrl.u32 %v408, 7
    %v410 = vsub.s32 %v407, %v409
    %v411 = vrot.slane %v402, %v410
    %v413 = vunpack.c.l.s4 1966171168
    %v414 = vunpack.c.0.s8 %v413
    %v415 = vlaneseq
    %v416 = vshrl.u32 %v415, 7
    %v417 = vsub.s32 %v414, %v416
    %v418 = vrot.slane %v404, %v417
    %v419 = vcombine.high %v411, %v411
    %v420 = vcombine.high %v418, %v418
    %v422 = vunpack.c.l.s4 1966171168
    %v423 = vunpack.c.0.s8 %v422
    %v424 = vlaneseq
    %v425 = vshrl.u32 %v424, 7
    %v426 = vsub.s32 %v423, %v425
    %v427 = vrot.slane %v411, %v426
    %v429 = vunpack.c.l.s4 1966171168
    %v430 = vunpack.c.0.s8 %v429
    %v431 = vlaneseq
    %v432 = vshrl.u32 %v431, 7
    %v433 = vsub.s32 %v430, %v432
    %v434 = vrot.slane %v418, %v433
    %v436 = vunpack.c.l.s4 1966171168
    %v437 = vunpack.c.0.s8 %v436
    %v438 = vlaneseq
    %v439 = vshrl.u32 %v438, 7
    %v440 = vsub.s32 %v437, %v439
    %v441 = vrot.slane %v419, %v440
    %v443 = vunpack.c.l.s4 1966171168
    %v444 = vunpack.c.0.s8 %v443
    %v445 = vlaneseq
    %v446 = vshrl.u32 %v445, 7
    %v447 = vsub.s32 %v444, %v446
    %v448 = vrot.slane %v420, %v447
    %v449 = vcombine.high %v427, %v427
    %v450 = vcombine.high %v434, %v434
    %v451 = vcombine.high %v441, %v441
    %v452 = vcombine.high %v448, %v448
    %461 = vst [vmem:[#allocation10] sm:$0x1] %v427
    %462 = vst [vmem:[#allocation10 + $0x1] sm:$0x1] %v441
    %463 = vst [vmem:[#allocation10 + $0x2] sm:$0x1] %v449
    %464 = vst [vmem:[#allocation10 + $0x3] sm:$0x1] %v451
    %465 = vst [vmem:[#allocation10 + $0x4] sm:$0x1] %v434
    %466 = vst [vmem:[#allocation10 + $0x5] sm:$0x1] %v448
    %467 = vst [vmem:[#allocation10 + $0x6] sm:$0x1] %v450
    %468 = vst [vmem:[#allocation10 + $0x7] sm:$0x1] %v452
    // Predicated region
    $region46: #{dqn_forward.1} parent=1 // pred_check
      _
    $region47: #{dqn_forward.1} parent=1 // pred_check_branch
      %470 = sbr.rel (0) target = $region49
    $region48: #{dqn_forward.1} parent=1 // pred_region
      %s472 = ssub.s32 128, 16
      %473 = vsyncadd [#allocation4], %s472
      %s474 = sshll.u32 [#allocation10], 4
      %s475 = int_to_ptr.vmem [resolvable:$true] %s474
      %480 = dma.vmem_to_hbm [thread:$0]  %s475, 16, %s7, [#allocation4], 16, 16, 1
    $region49: #{dqn_forward.1} parent=1 // pred_fallthru
      _
    // Predicated region
    $region50: #{dqn_forward.1} parent=1 // pred_check
      _
    $region51: #{dqn_forward.1} parent=1 // pred_check_branch
      %482 = sbr.rel (0) target = $region53
    $region52: #{dqn_forward.1} parent=1 // pred_region
      %483 = dma.done [#allocation4], 128
    $region53: #{dqn_forward.1} parent=1 // pred_fallthru
      _
    %484 = vsyncpa [#allocation3], 1
    %485 = vsyncpa [#allocation6], 1
    %486 = vsyncpa [#allocation9], 1
    %487 = vsyncpa [#allocation4], 1

</llo_original>
